<compile_context>
chip_gen: v6e
topology: v6e:2x2x1
jax: 0.10.0
libtpu: 0.0.40
codegen_flags: <defaults>
</compile_context>

<pallas_src>
import functools

import jax
import jax.numpy as jnp
from jax import lax
from jax.experimental import pallas as pl
from jax.experimental.pallas import tpu as pltpu


def _contrastive_partial_kernel(o1_ref, o2_ref, label_ref, out_ref, *,
                                margin, eps, valid_in_last, mask_last):
    o1 = o1_ref[...].astype(jnp.float32)           # (TB, D)
    o2 = o2_ref[...].astype(jnp.float32)
    lab = label_ref[0]                             # (1, TB) lane-dense f32

    diff = o1 - o2 + eps                           # eps on every component (VPU)
    sq = diff * diff                               # VPU
    d_feat = o1.shape[-1]

    # Row-sum on the MXU via a transposed-RHS contraction (the q.k^T pattern)
    # so the per-example squared distance comes out lane-dense as (1, TB):
    # a handful of matmul pushes on the vector-extended slots instead of
    # ~log2(D) XLU rotates per 8 rows.  (8-row ones LHS = native MXU tile;
    # all 8 output rows are identical, keep row 0.)
    ones8 = jnp.ones((8, d_feat), jnp.float32)
    d2 = lax.dot_general(ones8, sq, (((1,), (1,)), ((), ())),
                         preferred_element_type=jnp.float32)[0:1, :]   # (1, TB)

    dist = jnp.sqrt(d2)                            # EUP on dense vregs
    hinge = jnp.maximum(margin - dist, 0.0)
    per_ex = (1.0 - lab) * d2 + lab * (hinge * hinge)                  # (1, TB)

    out_ref[...] = jnp.sum(per_ex, keepdims=True)  # (1, 1) partial sum

    if mask_last:
        # Only the last (ragged) tile pays for masking; every other tile
        # stores the unmasked sum above and skips this entirely.
        @pl.when(pl.program_id(0) == pl.num_programs(0) - 1)
        def _():
            lane = lax.broadcasted_iota(jnp.int32, per_ex.shape, 1)
            masked = jnp.where(lane < valid_in_last, per_ex, 0.0)
            out_ref[...] = jnp.sum(masked, keepdims=True)


def _device_kind():
    try:
        return jax.devices()[0].device_kind.lower()
    except Exception:
        return ""


def _pick_row_tile(B, D, itemsize, device_kind):
    """Largest sublane-aligned row tile fitting a per-buffer VMEM budget."""
    sub = max(8, 32 // max(1, itemsize))           # 8 f32 / 16 bf16 / 32 int8
    d_pad = ((D + 127) // 128) * 128               # lanes pad to 128 in VMEM
    # ~2 MiB per (input, pipeline-buffer) pair sits at the HBM roofline on
    # v5e/v6e (keeps total pipeline < 16 MiB default scoped VMEM on v5e);
    # v7x's 3.2 TB/s HBM benefits from ~4 MiB per buffer.
    per_buffer_budget = (4 << 20) if "v7" in device_kind else (2 << 20)
    tb = per_buffer_budget // (d_pad * itemsize)
    tb = max(sub, (tb // sub) * sub)
    if tb >= B:
        tb = B                                     # full-extent block
        # v7x has 2 TensorCores sharing HBM: split a large single-tile batch
        # so both cores get a "parallel" grid step.
        if ("v7" in device_kind and B >= 2 * sub
                and B * d_pad * itemsize >= (512 << 10)):
            half = (((B + 1) // 2 + sub - 1) // sub) * sub
            if half < B:
                tb = half
    return tb, sub


def contrastive_loss(output1, output2, label, margin=2.0, eps=1e-6, tile_b=None):
    """output1, output2: (B, D) (f32 or bf16); label: (B,) or (B, 1). -> scalar f32."""
    B, D = output1.shape
    itemsize = jnp.dtype(output1.dtype).itemsize
    kind = _device_kind()
    tb, sub = _pick_row_tile(B, D, itemsize, kind)
    if tile_b is not None:
        tb = max(1, min(int(tile_b), B))
        if tb < B:                                 # keep user tiles sublane-aligned
            tb = min(B, max(sub, (tb // sub) * sub))

    num_tiles = pl.cdiv(B, tb)
    mask_last = (B % tb) != 0
    valid_in_last = B - (num_tiles - 1) * tb

    # Lane-dense label: pad to a whole number of tiles (touches only B*4
    # bytes) and present a (1, 1, tb) block per grid step -> one contiguous
    # DMA instead of tb tiny 4-byte strided writes.
    lab = jnp.asarray(label, jnp.float32).reshape(-1)
    if num_tiles * tb != B:
        lab = jnp.pad(lab, (0, num_tiles * tb - B))
    lab = lab.reshape(num_tiles, 1, tb)

    kernel = functools.partial(
        _contrastive_partial_kernel,
        margin=float(margin), eps=float(eps),
        valid_in_last=int(valid_in_last), mask_last=bool(mask_last))

    cost = pl.CostEstimate(
        flops=5 * B * D + 10 * B,
        transcendentals=B,
        bytes_accessed=2 * B * D * itemsize + num_tiles * tb * 4 + num_tiles * 4)

    cp_kwargs = dict(dimension_semantics=("parallel",))
    if "v7" in kind:
        cp_kwargs["vmem_limit_bytes"] = 32 * 1024 * 1024

    partials = pl.pallas_call(
        kernel,
        out_shape=jax.ShapeDtypeStruct((num_tiles, 1), jnp.float32),
        grid=(num_tiles,),
        in_specs=[
            pl.BlockSpec((tb, D), lambda i: (i, 0)),
            pl.BlockSpec((tb, D), lambda i: (i, 0)),
            pl.BlockSpec((1, 1, tb), lambda i: (i, 0, 0)),
        ],
        out_specs=pl.BlockSpec((1, 1), lambda i: (i, 0)),
        compiler_params=pltpu.CompilerParams(**cp_kwargs),
        cost_estimate=cost,
    )(output1, output2, lab)

    # Finish the mean with a tiny reduction over per-tile partial sums.
    return jnp.sum(partials) / jnp.float32(B)


def _reference(output1, output2, label, margin=2.0, eps=1e-6):
    o1 = output1.astype(jnp.float32)
    o2 = output2.astype(jnp.float32)
    d = jnp.sqrt(jnp.sum((o1 - o2 + eps) ** 2, axis=-1))
    lab = jnp.asarray(label, jnp.float32).reshape(-1)
    return jnp.mean(
        (1.0 - lab) * d ** 2 + lab * jnp.maximum(margin - d, 0.0) ** 2
    )


if __name__ == "__main__":
    key = jax.random.PRNGKey(0)
    k1, k2, k3 = jax.random.split(key, 3)

    # Small shapes consistent with siamese embedding outputs.
    B, D = 8, 32
    output1 = jax.random.normal(k1, (B, D), dtype=jnp.float32)
    output2 = jax.random.normal(k2, (B, D), dtype=jnp.float32)
    label = jax.random.bernoulli(k3, 0.5, (B,)).astype(jnp.float32)

    loss = jax.block_until_ready(contrastive_loss(output1, output2, label, margin=2.0))
    ref = _reference(output1, output2, label, margin=2.0)
    # The d^2 reduce runs on the MXU, which may use bf16 passes at default
    # precision; everything else is f32, so allow ~1e-3 relative slack.
    assert jnp.allclose(loss, ref, rtol=2e-3, atol=1e-3), (loss, ref)

    # Multi-tile path with a ragged last tile and a non-aligned user tile_b
    # (gets rounded to the sublane multiple -> tb=8, 3 tiles, 4 valid rows
    # in the last one).
    B2, D2 = 20, 32
    kk1, kk2, kk3 = jax.random.split(jax.random.PRNGKey(0), 3)
    o1b = jax.random.normal(kk1, (B2, D2), dtype=jnp.float32)
    o2b = jax.random.normal(kk2, (B2, D2), dtype=jnp.float32)
    lb = jax.random.bernoulli(kk3, 0.5, (B2,)).astype(jnp.float32)
    loss2 = jax.block_until_ready(
        contrastive_loss(o1b, o2b, lb, margin=2.0, tile_b=5))
    ref2 = _reference(o1b, o2b, lb, margin=2.0)
    assert jnp.allclose(loss2, ref2, rtol=2e-3, atol=1e-3), (loss2, ref2)

    print("KERNEL_OK")
</pallas_src>

<mosaic_0001>
module attributes {stable_mosaic.version = 11 : i64} {
  func.func @_contrastive_partial_kernel(%arg0: i32, %arg1: memref<8x32xf32, #tpu.memory_space<vmem>>, %arg2: memref<8x32xf32, #tpu.memory_space<vmem>>, %arg3: memref<1x1x8xf32, #tpu.memory_space<vmem>>, %arg4: memref<1x1xf32, #tpu.memory_space<vmem>>) attributes {dimension_semantics = [#tpu.dimension_semantics<parallel>], iteration_bounds = array<i64: 1>, scalar_prefetch = 0 : i64, scratch_operands = 0 : i64, tpu.core_type = #tpu.core_type<tc>, window_params = [{transform_indices = @transform_0, window_bounds = array<i64: 8, 32>}, {transform_indices = @transform_1, window_bounds = array<i64: 8, 32>}, {transform_indices = @transform_2, window_bounds = array<i64: 1, 1, 8>}, {transform_indices = @transform_3, window_bounds = array<i64: 1, 1>}]} {
    %c0 = arith.constant 0 : index
    %c0_0 = arith.constant 0 : index
    %0 = vector.load %arg1[%c0, %c0_0] : memref<8x32xf32, #tpu.memory_space<vmem>>, vector<8x32xf32>
    %c0_1 = arith.constant 0 : index
    %c0_2 = arith.constant 0 : index
    %1 = vector.load %arg2[%c0_1, %c0_2] : memref<8x32xf32, #tpu.memory_space<vmem>>, vector<8x32xf32>
    %c0_3 = arith.constant 0 : index
    %c0_4 = arith.constant 0 : index
    %c0_5 = arith.constant 0 : index
    %2 = vector.load %arg3[%c0_3, %c0_4, %c0_5] : memref<1x1x8xf32, #tpu.memory_space<vmem>>, vector<1x1x8xf32>
    %3 = vector.shape_cast %2 : vector<1x1x8xf32> to vector<1x8xf32>
    %4 = arith.subf %0, %1 : vector<8x32xf32>
    %cst = arith.constant 9.99999997E-7 : f32
    %5 = vector.broadcast %cst : f32 to vector<8x32xf32>
    %6 = arith.addf %4, %5 : vector<8x32xf32>
    %7 = arith.mulf %6, %6 : vector<8x32xf32>
    %cst_6 = arith.constant 1.000000e+00 : f32
    %8 = vector.broadcast %cst_6 : f32 to vector<8x32xf32>
    %cst_7 = arith.constant dense<0.000000e+00> : vector<8x8xf32>
    %9 = tpu.matmul %8, %7, %cst_7 {dimension_numbers = #tpu.dot_dimension_numbers<[1], [1], [0], [0], [0, 0, 1, 0], [], []>} : vector<8x32xf32>, vector<8x32xf32>, vector<8x8xf32> -> vector<8x8xf32>
    %10 = vector.extract_strided_slice %9 {offsets = [0, 0], sizes = [1, 8], strides = [1, 1]} : vector<8x8xf32> to vector<1x8xf32>
    %11 = math.sqrt %10 : vector<1x8xf32>
    %cst_8 = arith.constant 2.000000e+00 : f32
    %12 = vector.broadcast %cst_8 : f32 to vector<1x8xf32>
    %13 = arith.subf %12, %11 : vector<1x8xf32>
    %cst_9 = arith.constant 0.000000e+00 : f32
    %14 = vector.broadcast %cst_9 : f32 to vector<1x8xf32>
    %15 = arith.maximumf %13, %14 : vector<1x8xf32>
    %cst_10 = arith.constant 1.000000e+00 : f32
    %16 = vector.broadcast %cst_10 : f32 to vector<1x8xf32>
    %17 = arith.subf %16, %3 : vector<1x8xf32>
    %18 = arith.mulf %17, %10 : vector<1x8xf32>
    %19 = arith.mulf %15, %15 : vector<1x8xf32>
    %20 = arith.mulf %3, %19 : vector<1x8xf32>
    %21 = arith.addf %18, %20 : vector<1x8xf32>
    %22 = vector.shape_cast %21 : vector<1x8xf32> to vector<1x1x8xf32>
    %cst_11 = arith.constant dense<0.000000e+00> : vector<1xf32>
    %23 = vector.multi_reduction <add>, %22, %cst_11 [1, 2] : vector<1x1x8xf32> to vector<1xf32>
    %24 = vector.shape_cast %23 : vector<1xf32> to vector<1x1x1xf32>
    %25 = vector.extract %24[0, 0, 0] : f32 from vector<1x1x1xf32>
    %26 = vector.broadcast %25 : f32 to vector<1x1xf32>
    %c0_12 = arith.constant 0 : index
    %c0_13 = arith.constant 0 : index
    %27 = vector.load %arg4[%c0_12, %c0_13] : memref<1x1xf32, #tpu.memory_space<vmem>>, vector<1x1xf32>
    tpu.vector_store %arg4[%c0_12, %c0_13], %26 {strides = array<i32>} : memref<1x1xf32, #tpu.memory_space<vmem>>, vector<1x1xf32>,
    return
  }
  func.func @transform_0(%arg0: i32) -> (i32, i32) {
    %c0_i32 = arith.constant 0 : i32
    %c0_i32_0 = arith.constant 0 : i32
    return %arg0, %c0_i32 : i32, i32
  }
  func.func @transform_1(%arg0: i32) -> (i32, i32) {
    %c0_i32 = arith.constant 0 : i32
    %c0_i32_0 = arith.constant 0 : i32
    return %arg0, %c0_i32 : i32, i32
  }
  func.func @transform_2(%arg0: i32) -> (i32, i32, i32) {
    %c0_i32 = arith.constant 0 : i32
    %c0_i32_0 = arith.constant 0 : i32
    %c0_i32_1 = arith.constant 0 : i32
    return %arg0, %c0_i32, %c0_i32_0 : i32, i32, i32
  }
  func.func @transform_3(%arg0: i32) -> (i32, i32) {
    %c0_i32 = arith.constant 0 : i32
    %c0_i32_0 = arith.constant 0 : i32
    return %arg0, %c0_i32 : i32, i32
  }
}

</mosaic_0001>

<llo_original>
// kernel: tpu_custom_call.1
$region0: #{tpu_custom_call.1}
  #allocation0 [shape = 'u32[]', space=smem, size = 0x4, offset = 0x4, fixed_abs, tag = 'smem constant byte address 0x4 - core index']
  #allocation1 [shape = 'u32[144,128]{1,0:T(1,128)}', space=vmem, size = 0x12000, scoped, tag = 'internal scratch']
  %s0 = inlined_call_operand.hbm [shape: f32[8,32], index: 0, kind: input, shape index: {}]
  %s1 = inlined_call_operand.hbm [shape: f32[8,32], index: 1, kind: input, shape index: {}]
  %s2 = inlined_call_operand.vmem [shape: f32[1,1,8], index: 2, kind: input, shape index: {}]
  %s3 = inlined_call_operand.hbm [shape: f32[1,1], index: 3, kind: output, shape index: {}]
  %s4 = sld [smem:[#allocation0]]
  $region30: #{tpu_custom_call.1} parent=0
    _
  %s6 = ssub.s32 1, %s4
  %s7 = scalar_select 0, %s6, %s4
  $region1: #{tpu_custom_call.1} parent=0
    #allocation2 [shape = 'u8[4096]{0}', space=vmem, size = 0x1000, scoped, tag = 'input window, operand 0, single buffered']
    #allocation3 [shape = 's32[1]{0}', space=sflag, size = 0x4, scoped, tag = 'scoped memory for tpu_custom_call.1']
    #allocation4 [shape = 's32[1]{0}', space=sflag, size = 0x4, scoped, tag = 'scoped memory for tpu_custom_call.1']
    #allocation5 [shape = 'u8[4096]{0}', space=vmem, size = 0x1000, scoped, tag = 'input window, operand 1, single buffered']
    #allocation6 [shape = 's32[1]{0}', space=sflag, size = 0x4, scoped, tag = 'scoped memory for tpu_custom_call.1']
    #allocation7 [shape = 'u8[512]{0}', space=vmem, size = 0x400, scoped, tag = 'output window, operand 0, single buffered']
    %8 = vsyncpa [#allocation3], 0
    %9 = vsyncpa [#allocation6], 0
    %10 = vsyncpa [#allocation4], 0
    // Predicated region
    $region2: #{tpu_custom_call.1} parent=1 // pred_check
      _
    $region3: #{tpu_custom_call.1} parent=1 // pred_check_branch
      %12 = sbr.rel (0) target = $region5
    $region4: #{tpu_custom_call.1} parent=1 // pred_region
      %s14 = ssub.s32 128, 128
      %15 = vsyncadd [#allocation3], %s14
      %s17 = sshll.u32 [#allocation2], 4
      %s18 = int_to_ptr.vmem [resolvable:$true] %s17
      %20 = dma.hbm_to_vmem [thread:$0]  %s0, 128, %s18, [#allocation3]
    $region5: #{tpu_custom_call.1} parent=1 // pred_fallthru
      _
    // Predicated region
    $region6: #{tpu_custom_call.1} parent=1 // pred_check
      _
    $region7: #{tpu_custom_call.1} parent=1 // pred_check_branch
      %22 = sbr.rel (0) target = $region9
    $region8: #{tpu_custom_call.1} parent=1 // pred_region
      %s24 = ssub.s32 128, 128
      %25 = vsyncadd [#allocation6], %s24
      %s27 = sshll.u32 [#allocation5], 4
      %s28 = int_to_ptr.vmem [resolvable:$true] %s27
      %30 = dma.hbm_to_vmem [thread:$0]  %s1, 128, %s28, [#allocation6]
    $region9: #{tpu_custom_call.1} parent=1 // pred_fallthru
      _
    // Predicated region
    $region10: #{tpu_custom_call.1} parent=1 // pred_check
      _
    $region11: #{tpu_custom_call.1} parent=1 // pred_check_branch
      %32 = sbr.rel (0) target = $region13
    $region12: #{tpu_custom_call.1} parent=1 // pred_region
      _
    $region13: #{tpu_custom_call.1} parent=1 // pred_fallthru
      _
    // Predicated region
    $region14: #{tpu_custom_call.1} parent=1 // pred_check
      _
    $region15: #{tpu_custom_call.1} parent=1 // pred_check_branch
      %34 = sbr.rel (0) target = $region17
    $region16: #{tpu_custom_call.1} parent=1 // pred_region
      %35 = dma.done [#allocation3], 128
    $region17: #{tpu_custom_call.1} parent=1 // pred_fallthru
      _
    // Predicated region
    $region18: #{tpu_custom_call.1} parent=1 // pred_check
      _
    $region19: #{tpu_custom_call.1} parent=1 // pred_check_branch
      %37 = sbr.rel (0) target = $region21
    $region20: #{tpu_custom_call.1} parent=1 // pred_region
      %38 = dma.done [#allocation6], 128
    $region21: #{tpu_custom_call.1} parent=1 // pred_fallthru
      _
    %v39 = vld [vmem:[#allocation2] sm:$0xff]
    %v40 = vld [vmem:[#allocation5] sm:$0xff]
    %v41 = vld [vmem:[%s2] sm:$0x1]
    %v42 = vsub.f32 %v39, %v40
    %v43 = vadd.f32 %v42, 1e-06
    %v44 = vmul.f32 %v43, %v43
    %vm45 = vcmask 261120
    %v47 = vsel %vm45, 1.0, 0
    %v50 = vsel %vm45, %v44, 0
    %52 = vmatprep.subr.mxu0 0.0
    %53 = vmatpush1.xpose.msra.mxu0 0.0
    %54 = vmatprep.subr.mxu0 0.0
    %55 = vmatpush1.xpose.msra.mxu0 0.0
    %56 = vmatprep.subr.mxu0 0.0
    %57 = vmatpush1.xpose.msra.mxu0 0.0
    %58 = vmatprep.subr.mxu0 0.0
    %59 = vmatpush1.xpose.msra.mxu0 0.0
    %60 = vmatprep.subr.mxu0 0.0
    %61 = vmatpush1.xpose.msra.mxu0 0.0
    %62 = vmatprep.subr.mxu0 0.0
    %63 = vmatpush1.xpose.msra.mxu0 0.0
    %64 = vmatprep.subr.mxu0 0.0
    %65 = vmatpush1.xpose.msra.mxu0 0.0
    %66 = vmatprep.subr.mxu0 0.0
    %67 = vmatpush1.xpose.msra.mxu0 0.0
    %68 = vmatprep.subr.mxu0 0.0
    %69 = vmatpush1.xpose.msra.mxu0 0.0
    %70 = vmatprep.subr.mxu0 0.0
    %71 = vmatpush1.xpose.msra.mxu0 0.0
    %72 = vmatprep.subr.mxu0 0.0
    %73 = vmatpush1.xpose.msra.mxu0 0.0
    %74 = vmatprep.subr.mxu0 0.0
    %75 = vmatpush1.xpose.msra.mxu0 0.0
    %76 = vmatprep.subr.mxu0 0.0
    %77 = vmatpush1.xpose.msra.mxu0 0.0
    %78 = vmatprep.subr.mxu0 0.0
    %79 = vmatpush1.xpose.msra.mxu0 0.0
    %80 = vmatprep.subr.mxu0 0.0
    %81 = vmatpush1.xpose.msra.mxu0 0.0
    %82 = vmatprep.subr.mxu0 0.0
    %83 = vmatpush1.xpose.msra.mxu0 %v50
    %84 = vmatprep.subr.mxu0 0.0
    %85 = vmatpush2.xpose.msra.mxu0 0.0
    %86 = vmatprep.subr.mxu0 0.0
    %87 = vmatpush2.xpose.msra.mxu0 0.0
    %88 = vmatprep.subr.mxu0 0.0
    %89 = vmatpush2.xpose.msra.mxu0 0.0
    %90 = vmatprep.subr.mxu0 0.0
    %91 = vmatpush2.xpose.msra.mxu0 0.0
    %92 = vmatprep.subr.mxu0 0.0
    %93 = vmatpush2.xpose.msra.mxu0 0.0
    %94 = vmatprep.subr.mxu0 0.0
    %95 = vmatpush2.xpose.msra.mxu0 0.0
    %96 = vmatprep.subr.mxu0 0.0
    %97 = vmatpush2.xpose.msra.mxu0 0.0
    %98 = vmatprep.subr.mxu0 0.0
    %99 = vmatpush2.xpose.msra.mxu0 0.0
    %100 = vmatprep.subr.mxu0 0.0
    %101 = vmatpush2.xpose.msra.mxu0 0.0
    %102 = vmatprep.subr.mxu0 0.0
    %103 = vmatpush2.xpose.msra.mxu0 0.0
    %104 = vmatprep.subr.mxu0 0.0
    %105 = vmatpush2.xpose.msra.mxu0 0.0
    %106 = vmatprep.subr.mxu0 0.0
    %107 = vmatpush2.xpose.msra.mxu0 0.0
    %108 = vmatprep.subr.mxu0 0.0
    %109 = vmatpush2.xpose.msra.mxu0 0.0
    %110 = vmatprep.subr.mxu0 0.0
    %111 = vmatpush2.xpose.msra.mxu0 0.0
    %112 = vmatprep.subr.mxu0 0.0
    %113 = vmatpush2.xpose.msra.mxu0 0.0
    %114 = vmatprep.subr.mxu0 0.0
    %115 = vmatpush2.xpose.msra.mxu0 0.0
    %116 = vmatprep.mubr.f32.mxu0 0.0
    %117 = vmatmul.mubr.f32.gmra.mxu0 %v47
    %v118 = vpop.f32.mrf.mxu0
    %v119 = vadd.f32 0.0, %v118
    %v120 = vpop.f32.mrf.mxu0
    %121 = vdwg.mxu0
    %v122 = vrsqrt.pop %v119
    %v123 = vmul.f32 %v119, %v122
    %vm124 = vcmp.eq.f32.partialorder %v119, inf
    %v125 = vsel %vm124, %v119, %v123
    %vm126 = vcmp.eq.f32.partialorder %v119, 0.0
    %v127 = vand.u32 %v119, 2147483648
    %v128 = vsel %vm126, %v127, %v125
    %v129 = vsub.f32 2.0, %v128
    %v130 = vmax.f32 %v129, 0.0
    %v131 = vsub.f32 1.0, %v41
    %v132 = vmul.f32 %v131, %v119
    %v133 = vmul.f32 %v130, %v130
    %v134 = vmul.f32 %v41, %v133
    %v135 = vadd.f32 %v132, %v134
    %vm136 = vcmask 57344
    %v137 = vsel %vm136, %v135, 0.0
    %138 = vadd.xlane.f32.xlu0 %v137
    %v139 = vpop.xlane.xlu0 %138
    %v140 = vrot.slane %v139, 4
    %v141 = vadd.f32 %v139, %v140
    %v142 = vrot.slane %v141, 2
    %v143 = vadd.f32 %v141, %v142
    %v144 = vrot.slane %v143, 1
    %v145 = vadd.f32 %v143, %v144
    %s146 = vtos %v145
    %v147 = vstv %s146
    %vm148 = vcmask 0
    %149 = vst.msk [vmem:[#allocation7] sm:$0x1] %vm148, %v147
    // Predicated region
    $region22: #{tpu_custom_call.1} parent=1 // pred_check
      _
    $region23: #{tpu_custom_call.1} parent=1 // pred_check_branch
      %151 = sbr.rel (0) target = $region25
    $region24: #{tpu_custom_call.1} parent=1 // pred_region
      %s153 = ssub.s32 16, 16
      %154 = vsyncadd [#allocation4], %s153
      %s156 = sshll.u32 [#allocation7], 4
      %s157 = int_to_ptr.vmem [resolvable:$true] %s156
      %159 = dma.vmem_to_hbm [thread:$0]  %s157, 16, %s3, [#allocation4]
    $region25: #{tpu_custom_call.1} parent=1 // pred_fallthru
      _
    // Predicated region
    $region26: #{tpu_custom_call.1} parent=1 // pred_check
      _
    $region27: #{tpu_custom_call.1} parent=1 // pred_check_branch
      %161 = sbr.rel (0) target = $region29
    $region28: #{tpu_custom_call.1} parent=1 // pred_region
      %162 = dma.done [#allocation4], 16
    $region29: #{tpu_custom_call.1} parent=1 // pred_fallthru
      _
    %163 = vsyncpa [#allocation3], 1
    %164 = vsyncpa [#allocation6], 1
    %165 = vsyncpa [#allocation4], 1

</llo_original>
